<compile_context>
chip_gen: v7x
topology: tpu7x:2x2x1
jax: 0.10.0
libtpu: 0.0.40
codegen_flags: <defaults>
</compile_context>

<pallas_src>
import functools
import math

import jax
import jax.numpy as jnp
from jax.experimental import pallas as pl
from jax.experimental.pallas import tpu as pltpu

_LOG_EPS = math.log(1e-15)     # lower clamp, in log space
# NOTE: log(1 - 1e-15) rounds to exactly 0.0 in float32, so clipping log-probs
# at 0.0 is equivalent to the reference clamp(p, eps, 1-eps) followed by -log
# *in f32*.  Do not reuse this constant if intermediates ever become f64.
_LOG_ONE_MINUS_EPS = 0.0


def _cll_kernel(*refs, reduction, has_weights, n_valid):
    """Per-tile body.

    refs (with weights):    logits (TB, C) | labels (1, TB) i32 | weights (C, 1) f32 | out
    refs (without weights): logits (TB, C) | labels (1, TB) i32 | out
    out: (1, TB) nll tile for reduction='none', else (1, 1, 1) per-tile partial.
    """
    if has_weights:
        logits_ref, y_ref, w_ref, out_ref = refs
    else:
        logits_ref, y_ref, out_ref = refs
        w_ref = None

    # Class<->lane flip in-kernel: batch on the 128-wide lane axis, classes on
    # sublanes -> dense vregs for the EUP exp/log and cheap sublane reductions.
    logits = logits_ref[...].astype(jnp.float32).T             # (C, TB)
    C, TB = logits.shape

    # log-softmax pieces along the class (sublane) axis; exp/log run on the EUP.
    m = jnp.max(logits, axis=0, keepdims=True)                  # (1, TB)
    lse = jnp.log(jnp.sum(jnp.exp(logits - m), axis=0, keepdims=True))

    # gather logits[y[b], b] via one-hot select + sublane reduction
    y = y_ref[...]                                              # (1, TB) int32
    cls = jax.lax.broadcasted_iota(jnp.int32, (C, TB), 0)
    onehot = cls == y                                           # (C, TB)
    gathered = jnp.sum(jnp.where(onehot, logits, 0.0), axis=0, keepdims=True)

    # clamp(p, 1e-15, 1-1e-15) then -log  ==  -clip(logp, log(1e-15), 0) in f32
    logp = jnp.clip(gathered - m - lse, _LOG_EPS, _LOG_ONE_MINUS_EPS)
    nll = -logp                                                 # (1, TB)

    if has_weights:
        w_sel = jnp.sum(jnp.where(onehot, w_ref[...], 0.0), axis=0, keepdims=True)
        nll = nll * w_sel

    if reduction == "none":
        # Lane-dense store; the ragged tail of the last tile is dropped by the
        # clamped output writeback DMA.
        out_ref[...] = nll
    else:
        # Mask ragged-tail columns out of the partial sum.  Must be a select
        # (not multiply-by-mask) so NaN/inf from uninitialized padded lanes
        # cannot leak in.
        col = jax.lax.broadcasted_iota(jnp.int32, (1, TB), 1) + pl.program_id(0) * TB
        nll = jnp.where(col < n_valid, nll, 0.0)
        out_ref[...] = jnp.sum(nll).reshape(1, 1, 1)


def _round_up(x, m):
    return ((x + m - 1) // m) * m


def _vmem_capacity_bytes():
    try:
        return int(pltpu.get_tpu_info().vmem_capacity_bytes)
    except Exception:                      # CPU / interpret / older runtime
        return 64 * 1024 * 1024            # v7x physical; conservative elsewhere


def _pick_tile(B, C, itemsize, tile_b, vmem_bytes):
    """Batch-tile size against the per-generation VMEM budget.

    Returns (TB, num_tiles, bytes_per_lane)."""
    # Double-buffered working-set budget: <= 40% of physical and <= 40 MiB
    # (v7x: ~25 MiB of its 64 MiB; v5e/v6e: 40 MiB of their 128 MiB).
    budget = min((vmem_bytes * 2) // 5, 40 * 1024 * 1024)

    c_lane = _round_up(C, 128)             # (TB, C) input block lane-pads to 128 in VMEM
    c_sub = _round_up(C, 8)
    bytes_per_lane = (
        2 * c_lane * itemsize              # logits block, double buffered
        + 2 * 8 * 4                        # (1, TB) i32 labels block, sublane-padded to 8, x2
        + 8 * 4                            # (1, TB) f32 'none' output block
        + 6 * c_sub * 4                    # f32 transpose/exp/one-hot intermediates
    )
    cap = max(256, (budget // bytes_per_lane) // 128 * 128)

    if tile_b is not None:                 # user override acts as an extra cap
        cap = min(cap, max(128, _round_up(int(tile_b), 128)))

    if B <= cap:
        # Single exact-size tile: block extents equal the array extents, which
        # always satisfies the (8, 128) divisibility rule.
        return B, 1, bytes_per_lane
    return cap, pl.cdiv(B, cap), bytes_per_lane


def cumulative_link_loss(y_pred, y_true, *, reduction="elementwise_mean",
                         class_weights=None, tile_b=None):
    """JAX/Pallas equivalent of CumulativeLinkLoss.forward (softmax + NLL gather)."""
    if reduction not in ("elementwise_mean", "none", "sum"):
        raise ValueError(f"{reduction} is not a valid reduction")

    y_pred = jnp.asarray(y_pred)
    if not jnp.issubdtype(y_pred.dtype, jnp.floating):
        y_pred = y_pred.astype(jnp.float32)
    if y_pred.ndim != 2:
        raise ValueError("y_pred must be [batch, num_classes]")
    B, C = y_pred.shape
    # Labels are tiny (B ints); logits stay untouched in their native layout.
    y_true = jnp.asarray(y_true, jnp.int32).reshape(1, B)

    vmem_bytes = _vmem_capacity_bytes()
    TB, num_tiles, bytes_per_lane = _pick_tile(B, C, y_pred.dtype.itemsize,
                                               tile_b, vmem_bytes)

    in_specs = [
        pl.BlockSpec((TB, C), lambda i: (i, 0)),   # native (B, C) layout, batch-tiled
        pl.BlockSpec((1, TB), lambda i: (0, i)),
    ]
    args = [y_pred, y_true]
    has_weights = class_weights is not None
    if has_weights:
        w = jnp.asarray(class_weights, jnp.float32).reshape(C, 1)
        in_specs.append(pl.BlockSpec((C, 1), lambda i: (0, 0)))
        args.append(w)

    if reduction == "none":
        out_shape = jax.ShapeDtypeStruct((1, B), jnp.float32)
        out_specs = pl.BlockSpec((1, TB), lambda i: (0, i))
    else:
        # One partial sum per batch tile; the tiny final reduce happens in the
        # wrapper so the grid axis stays parallel.
        out_shape = jax.ShapeDtypeStruct((num_tiles, 1, 1), jnp.float32)
        out_specs = pl.BlockSpec((1, 1, 1), lambda i: (i, 0, 0))

    # v7x has two TensorCores per chip; CORE_PARALLEL guarantees the batch-tile
    # axis is sharded across both (EUP exp throughput starts to bind there).
    try:
        device_kind = jax.devices()[0].device_kind.lower()
    except Exception:
        device_kind = ""
    if "v7" in device_kind and hasattr(pltpu, "CORE_PARALLEL"):
        dim_sem = (pltpu.CORE_PARALLEL,)
    else:
        dim_sem = ("parallel",)

    # Explicit scoped-VMEM limit so the enlarged tiles double-buffer on every
    # generation while staying well inside v7x's 64 MiB physical VMEM.
    working_set = bytes_per_lane * TB
    vmem_limit = int(min((vmem_bytes * 3) // 4,
                         max(32 * 1024 * 1024, working_set + (16 << 20))))

    kernel = functools.partial(_cll_kernel, reduction=reduction,
                               has_weights=has_weights, n_valid=B)

    out = pl.pallas_call(
        kernel,
        out_shape=out_shape,
        grid=(num_tiles,),
        in_specs=in_specs,
        out_specs=out_specs,
        compiler_params=pltpu.CompilerParams(
            dimension_semantics=dim_sem,
            vmem_limit_bytes=vmem_limit),
    )(*args)

    if reduction == "none":
        return out[0, :B].reshape(B, 1)
    if reduction == "sum":
        return jnp.sum(out)
    return jnp.sum(out) / jnp.float32(B)   # elementwise_mean: divide by true B


if __name__ == "__main__":
    key = jax.random.PRNGKey(0)
    k1, k2, k3 = jax.random.split(key, 3)

    B, C = 8, 16                                            # batch, num_classes
    y_pred = jax.random.normal(k1, (B, C), dtype=jnp.float32)     # logits
    y_true = jax.random.randint(k2, (B,), 0, C, dtype=jnp.int32)

    # pure-JAX reference of the module forward
    probs_ref = jax.nn.softmax(y_pred, axis=1)
    lik_ref = jnp.clip(probs_ref[jnp.arange(B), y_true], 1e-15, 1 - 1e-15)
    nll_ref = -jnp.log(lik_ref)

    # default module config: reduction='elementwise_mean', class_weights=None
    loss = cumulative_link_loss(y_pred, y_true)
    jax.block_until_ready(loss)
    assert jnp.allclose(loss, jnp.mean(nll_ref), rtol=1e-5, atol=1e-6), (loss, jnp.mean(nll_ref))

    # 'sum' and 'none' reductions
    loss_sum = cumulative_link_loss(y_pred, y_true, reduction="sum")
    assert jnp.allclose(loss_sum, jnp.sum(nll_ref), rtol=1e-5, atol=1e-5)
    loss_none = cumulative_link_loss(y_pred, y_true, reduction="none")
    assert loss_none.shape == (B, 1)
    assert jnp.allclose(loss_none[:, 0], nll_ref, rtol=1e-5, atol=1e-6)

    # class-weight path
    cw = jax.random.uniform(k3, (C,), dtype=jnp.float32) + 0.5
    loss_w = cumulative_link_loss(y_pred, y_true, class_weights=cw)
    assert jnp.allclose(loss_w, jnp.mean(nll_ref * cw[y_true]), rtol=1e-5, atol=1e-6)

    # multi-tile path with an unpadded ragged last tile (exercises in-kernel masking
    # for 'sum'/'mean' and clamped output writeback for 'none')
    B2 = 300
    kk1, kk2 = jax.random.split(k3)
    yp2 = jax.random.normal(kk1, (B2, C), dtype=jnp.float32)
    yt2 = jax.random.randint(kk2, (B2,), 0, C, dtype=jnp.int32)
    probs2 = jax.nn.softmax(yp2, axis=1)
    nll2 = -jnp.log(jnp.clip(probs2[jnp.arange(B2), yt2], 1e-15, 1 - 1e-15))
    loss2 = cumulative_link_loss(yp2, yt2, tile_b=128)
    jax.block_until_ready(loss2)
    assert jnp.allclose(loss2, jnp.mean(nll2), rtol=1e-5, atol=1e-5), (loss2, jnp.mean(nll2))
    loss2_none = cumulative_link_loss(yp2, yt2, reduction="none", tile_b=128)
    assert jnp.allclose(loss2_none[:, 0], nll2, rtol=1e-5, atol=1e-5)

    # bf16 logits accepted natively (upcast happens on the VMEM tile, not in HBM)
    yp_bf16 = y_pred.astype(jnp.bfloat16)
    probs_bf = jax.nn.softmax(yp_bf16.astype(jnp.float32), axis=1)
    nll_bf = -jnp.log(jnp.clip(probs_bf[jnp.arange(B), y_true], 1e-15, 1 - 1e-15))
    loss_bf16 = cumulative_link_loss(yp_bf16, y_true)
    assert jnp.allclose(loss_bf16, jnp.mean(nll_bf), rtol=1e-4, atol=1e-4)

    jax.block_until_ready((loss, loss_sum, loss_none, loss_w, loss2, loss2_none, loss_bf16))
    print("KERNEL_OK")
</pallas_src>

<mosaic_0001>
module attributes {stable_mosaic.version = 11 : i64} {
  func.func @_cll_kernel(%arg0: i32, %arg1: memref<8x16xf32, #tpu.memory_space<vmem>>, %arg2: memref<1x8xi32, #tpu.memory_space<vmem>>, %arg3: memref<1x1x1xf32, #tpu.memory_space<vmem>>) attributes {dimension_semantics = [#tpu.dimension_semantics<parallel>], iteration_bounds = array<i64: 1>, scalar_prefetch = 0 : i64, scratch_operands = 0 : i64, tpu.core_type = #tpu.core_type<tc>, window_params = [{transform_indices = @transform_0, window_bounds = array<i64: 8, 16>}, {transform_indices = @transform_1, window_bounds = array<i64: 1, 8>}, {transform_indices = @transform_2, window_bounds = array<i64: 1, 1, 1>}]} {
    %c0 = arith.constant 0 : index
    %c0_0 = arith.constant 0 : index
    %0 = vector.load %arg1[%c0, %c0_0] : memref<8x16xf32, #tpu.memory_space<vmem>>, vector<8x16xf32>
    %1 = tpu.transpose %0, [1, 0] : vector<8x16xf32> -> vector<16x8xf32>
    %cst = arith.constant dense<0xFF800000> : vector<8xf32>
    %2 = vector.multi_reduction <maximumf>, %1, %cst [0] : vector<16x8xf32> to vector<8xf32>
    %3 = vector.shape_cast %2 : vector<8xf32> to vector<1x8xf32>
    %4 = vector.broadcast %3 : vector<1x8xf32> to vector<16x8xf32>
    %5 = arith.subf %1, %4 : vector<16x8xf32>
    %6 = math.exp %5 : vector<16x8xf32>
    %cst_1 = arith.constant dense<0.000000e+00> : vector<8xf32>
    %7 = vector.multi_reduction <add>, %6, %cst_1 [0] : vector<16x8xf32> to vector<8xf32>
    %8 = vector.shape_cast %7 : vector<8xf32> to vector<1x8xf32>
    %9 = math.log %8 : vector<1x8xf32>
    %c0_2 = arith.constant 0 : index
    %c0_3 = arith.constant 0 : index
    %10 = vector.load %arg2[%c0_2, %c0_3] : memref<1x8xi32, #tpu.memory_space<vmem>>, vector<1x8xi32>
    %11 = tpu.iota {dimensions = array<i32: 0>} : vector<16x8xi32>
    %12 = vector.broadcast %10 : vector<1x8xi32> to vector<16x8xi32>
    %13 = arith.cmpi eq, %11, %12 : vector<16x8xi32>
    %cst_4 = arith.constant 0.000000e+00 : f32
    %14 = vector.broadcast %cst_4 : f32 to vector<16x8xf32>
    %15 = arith.select %13, %1, %14 : vector<16x8xi1>, vector<16x8xf32>
    %cst_5 = arith.constant dense<0.000000e+00> : vector<8xf32>
    %16 = vector.multi_reduction <add>, %15, %cst_5 [0] : vector<16x8xf32> to vector<8xf32>
    %17 = vector.shape_cast %16 : vector<8xf32> to vector<1x8xf32>
    %18 = arith.subf %17, %3 : vector<1x8xf32>
    %19 = arith.subf %18, %9 : vector<1x8xf32>
    %cst_6 = arith.constant -34.5387764 : f32
    %cst_7 = arith.constant 0.000000e+00 : f32
    %20 = vector.broadcast %cst_6 : f32 to vector<1x8xf32>
    %21 = arith.maximumf %20, %19 : vector<1x8xf32>
    %22 = vector.broadcast %cst_7 : f32 to vector<1x8xf32>
    %23 = arith.minimumf %22, %21 : vector<1x8xf32>
    %cst_8 = arith.constant 0.000000e+00 : f32
    %24 = vector.broadcast %cst_8 : f32 to vector<1x8xf32>
    %25 = arith.subf %24, %23 : vector<1x8xf32>
    %26 = tpu.iota {dimensions = array<i32: 1>} : vector<1x8xi32>
    %c8_i32 = arith.constant 8 : i32
    %27 = arith.muli %arg0, %c8_i32 : i32
    %28 = vector.broadcast %27 : i32 to vector<1x8xi32>
    %29 = arith.addi %26, %28 : vector<1x8xi32>
    %c8_i32_9 = arith.constant 8 : i32
    %30 = vector.broadcast %c8_i32_9 : i32 to vector<1x8xi32>
    %31 = arith.cmpi slt, %29, %30 : vector<1x8xi32>
    %cst_10 = arith.constant 0.000000e+00 : f32
    %32 = vector.broadcast %cst_10 : f32 to vector<1x8xf32>
    %33 = arith.select %31, %25, %32 : vector<1x8xi1>, vector<1x8xf32>
    %34 = vector.shape_cast %33 : vector<1x8xf32> to vector<1x1x8xf32>
    %cst_11 = arith.constant dense<0.000000e+00> : vector<1xf32>
    %35 = vector.multi_reduction <add>, %34, %cst_11 [1, 2] : vector<1x1x8xf32> to vector<1xf32>
    %36 = vector.shape_cast %35 : vector<1xf32> to vector<1x1x1xf32>
    %37 = vector.extract %36[0, 0, 0] : f32 from vector<1x1x1xf32>
    %38 = vector.broadcast %37 : f32 to vector<1x1x1xf32>
    %c0_12 = arith.constant 0 : index
    %c0_13 = arith.constant 0 : index
    %c0_14 = arith.constant 0 : index
    %39 = vector.load %arg3[%c0_12, %c0_13, %c0_14] : memref<1x1x1xf32, #tpu.memory_space<vmem>>, vector<1x1x1xf32>
    tpu.vector_store %arg3[%c0_12, %c0_13, %c0_14], %38 {strides = array<i32>} : memref<1x1x1xf32, #tpu.memory_space<vmem>>, vector<1x1x1xf32>,
    return
  }
  func.func @transform_0(%arg0: i32) -> (i32, i32) {
    %c0_i32 = arith.constant 0 : i32
    %c0_i32_0 = arith.constant 0 : i32
    return %arg0, %c0_i32 : i32, i32
  }
  func.func @transform_1(%arg0: i32) -> (i32, i32) {
    %c0_i32 = arith.constant 0 : i32
    %c0_i32_0 = arith.constant 0 : i32
    return %c0_i32, %arg0 : i32, i32
  }
  func.func @transform_2(%arg0: i32) -> (i32, i32, i32) {
    %c0_i32 = arith.constant 0 : i32
    %c0_i32_0 = arith.constant 0 : i32
    %c0_i32_1 = arith.constant 0 : i32
    return %arg0, %c0_i32, %c0_i32_0 : i32, i32, i32
  }
}

</mosaic_0001>

<llo_original>
// kernel: tpu_custom_call.1
$region0: #{tpu_custom_call.1}
  #allocation0 [shape = 'u32[]', space=smem, size = 0x4, offset = 0x4, fixed_abs, tag = 'smem constant byte address 0x4 - core index']
  #allocation1 [shape = 'u32[144,128]{1,0:T(1,128)}', space=vmem, size = 0x12000, scoped, tag = 'internal scratch']
  %s0 = inlined_call_operand.hbm [shape: f32[8,16], index: 0, kind: input, shape index: {}]
  %s1 = inlined_call_operand.vmem [shape: s32[1,8], index: 1, kind: input, shape index: {}]
  %s2 = inlined_call_operand.hbm [shape: f32[1,1,1], index: 2, kind: output, shape index: {}]
  %s3 = sld [smem:[#allocation0]]
  $region22: #{tpu_custom_call.1} parent=0
    _
  %s5 = ssub.s32 1, %s3
  %s6 = scalar_select 0, %s5, %s3
  $region1: #{tpu_custom_call.1} parent=0
    #allocation2 [shape = 'u8[4096]{0}', space=vmem, size = 0x1000, scoped, tag = 'input window, operand 0, single buffered']
    #allocation3 [shape = 's32[1]{0}', space=sflag, size = 0x4, scoped, tag = 'scoped memory for tpu_custom_call.1']
    #allocation4 [shape = 's32[1]{0}', space=sflag, size = 0x4, scoped, tag = 'scoped memory for tpu_custom_call.1']
    #allocation5 [shape = 'u8[512]{0}', space=vmem, size = 0x400, scoped, tag = 'output window, operand 0, single buffered']
    %7 = vsyncpa [#allocation3], 0
    %8 = vsyncpa [#allocation4], 0
    // Predicated region
    $region2: #{tpu_custom_call.1} parent=1 // pred_check
      _
    $region3: #{tpu_custom_call.1} parent=1 // pred_check_branch
      %10 = sbr.rel (0) target = $region5
    $region4: #{tpu_custom_call.1} parent=1 // pred_region
      %s12 = ssub.s32 128, 128
      %13 = vsyncadd [#allocation3], %s12
      %s15 = sshll.u32 [#allocation2], 4
      %s16 = int_to_ptr.vmem [resolvable:$true] %s15
      %18 = dma.hbm_to_vmem [thread:$0]  %s0, 128, %s16, [#allocation3]
    $region5: #{tpu_custom_call.1} parent=1 // pred_fallthru
      _
    // Predicated region
    $region6: #{tpu_custom_call.1} parent=1 // pred_check
      _
    $region7: #{tpu_custom_call.1} parent=1 // pred_check_branch
      %20 = sbr.rel (0) target = $region9
    $region8: #{tpu_custom_call.1} parent=1 // pred_region
      _
    $region9: #{tpu_custom_call.1} parent=1 // pred_fallthru
      _
    // Predicated region
    $region10: #{tpu_custom_call.1} parent=1 // pred_check
      _
    $region11: #{tpu_custom_call.1} parent=1 // pred_check_branch
      %22 = sbr.rel (0) target = $region13
    $region12: #{tpu_custom_call.1} parent=1 // pred_region
      %23 = dma.done [#allocation3], 128
    $region13: #{tpu_custom_call.1} parent=1 // pred_fallthru
      _
    %v24 = vld [vmem:[#allocation2] sm:$0xff]
    %25 = vxpose.xlu0.b32.start [1/16] %v24, 128
    %26 = vxpose.xlu0.b32.cont [2/16] 0.0, 128
    %27 = vxpose.xlu0.b32.cont [3/16] 0.0, 128
    %28 = vxpose.xlu0.b32.cont [4/16] 0.0, 128
    %29 = vxpose.xlu0.b32.cont [5/16] 0.0, 128
    %30 = vxpose.xlu0.b32.cont [6/16] 0.0, 128
    %31 = vxpose.xlu0.b32.cont [7/16] 0.0, 128
    %32 = vxpose.xlu0.b32.cont [8/16] 0.0, 128
    %33 = vxpose.xlu0.b32.cont [9/16] 0.0, 128
    %34 = vxpose.xlu0.b32.cont [10/16] 0.0, 128
    %35 = vxpose.xlu0.b32.cont [11/16] 0.0, 128
    %36 = vxpose.xlu0.b32.cont [12/16] 0.0, 128
    %37 = vxpose.xlu0.b32.cont [13/16] 0.0, 128
    %38 = vxpose.xlu0.b32.cont [14/16] 0.0, 128
    %39 = vxpose.xlu0.b32.cont [15/16] 0.0, 128
    %40 = vxpose.xlu0.b32.end [16/16] 0.0, 128
    %v41 = vpop.trf.xlu0
    %v42 = vpop.trf.xlu0
    %v43 = vpop.trf.xlu0
    %v44 = vpop.trf.xlu0
    %v45 = vpop.trf.xlu0
    %v46 = vpop.trf.xlu0
    %v47 = vpop.trf.xlu0
    %v48 = vpop.trf.xlu0
    %v49 = vpop.trf.xlu0
    %v50 = vpop.trf.xlu0
    %v51 = vpop.trf.xlu0
    %v52 = vpop.trf.xlu0
    %v53 = vpop.trf.xlu0
    %v54 = vpop.trf.xlu0
    %v55 = vpop.trf.xlu0
    %v56 = vpop.trf.xlu0
    %vm57 = vcmask 64512
    %v58 = vsel %vm57, %v41, -inf
    %v59 = vsel %vm57, %v42, -inf
    %v60 = vmax.f32 %v58, %v59
    %v61 = vrot.slane %v60, 4
    %v62 = vmax.f32 %v60, %v61
    %v63 = vrot.slane %v62, 2
    %v64 = vmax.f32 %v62, %v63
    %v65 = vrot.slane %v64, 1
    %v66 = vmax.f32 %v64, %v65
    %v67 = vsub.f32 %v41, %v66
    %v68 = vsub.f32 %v42, %v66
    %v69 = vmul.f32 %v67, 1.442695
    %v70 = vpow.pop %v69
    %v71 = vmul.f32 %v68, 1.442695
    %v72 = vpow.pop %v71
    %v73 = vsel %vm57, %v70, 0.0
    %v74 = vsel %vm57, %v72, 0.0
    %v75 = vadd.f32 %v73, %v74
    %v76 = vrot.slane %v75, 4
    %v77 = vadd.f32 %v75, %v76
    %v78 = vrot.slane %v77, 2
    %v79 = vadd.f32 %v77, %v78
    %v80 = vrot.slane %v79, 1
    %v81 = vadd.f32 %v79, %v80
    %v82 = vlog2.pop %v81
    %v83 = vmul.f32 %v82, 0.6931472
    %v84 = vld [vmem:[%s1] sm:$0x1]
    %v85 = vlaneseq
    %v86 = vshrl.u32 %v85, 7
    %v87 = vadd.s32 %v86, 8
    %v88 = vlaneseq
    %v89 = vshrl.u32 %v88, 7
    %v90 = vsub.s32 0, %v89
    %v91 = vrot.slane %v84, %v90
    %vm92 = vcmp.eq.s32.totalorder %v86, %v91
    %vm93 = vcmp.eq.s32.totalorder %v87, %v91
    %v94 = vsel %vm92, %v41, 0.0
    %v95 = vsel %vm93, %v42, 0.0
    %v96 = vsel %vm57, %v94, 0.0
    %v97 = vsel %vm57, %v95, 0.0
    %v98 = vadd.f32 %v96, %v97
    %v99 = vrot.slane %v98, 4
    %v100 = vadd.f32 %v98, %v99
    %v101 = vrot.slane %v100, 2
    %v102 = vadd.f32 %v100, %v101
    %v103 = vrot.slane %v102, 1
    %v104 = vadd.f32 %v102, %v103
    %v105 = vsub.f32 %v104, %v66
    %v106 = vsub.f32 %v105, %v83
    %v107 = vmax.f32 %v106, -34.538776
    %v108 = vmin.f32 %v107, 0.0
    %v109 = vsub.f32 0.0, %v108
    %v110 = vlaneseq
    %v111 = vand.u32 %v110, 127
    %s112 = smul.u32 0, 8
    %v113 = vstv %s112
    %v114 = vadd.s32 %v111, %v113
    %vm115 = vcmp.lt.s32.totalorder %v114, 8
    %v116 = vsel %vm115, %v109, 0.0
    %vm117 = vcmask 57344
    %v118 = vsel %vm117, %v116, 0.0
    %119 = vadd.xlane.f32.xlu0 %v118
    %v120 = vpop.xlane.xlu0 %119
    %v121 = vrot.slane %v120, 4
    %v122 = vadd.f32 %v120, %v121
    %v123 = vrot.slane %v122, 2
    %v124 = vadd.f32 %v122, %v123
    %v125 = vrot.slane %v124, 1
    %v126 = vadd.f32 %v124, %v125
    %s127 = vtos %v126
    %v128 = vstv %s127
    %vm129 = vcmask 0
    %130 = vst.msk [vmem:[#allocation5] sm:$0x1] %vm129, %v128
    // Predicated region
    $region14: #{tpu_custom_call.1} parent=1 // pred_check
      _
    $region15: #{tpu_custom_call.1} parent=1 // pred_check_branch
      %132 = sbr.rel (0) target = $region17
    $region16: #{tpu_custom_call.1} parent=1 // pred_region
      %s134 = ssub.s32 16, 16
      %135 = vsyncadd [#allocation4], %s134
      %s137 = sshll.u32 [#allocation5], 4
      %s138 = int_to_ptr.vmem [resolvable:$true] %s137
      %140 = dma.vmem_to_hbm [thread:$0]  %s138, 16, %s2, [#allocation4]
    $region17: #{tpu_custom_call.1} parent=1 // pred_fallthru
      _
    // Predicated region
    $region18: #{tpu_custom_call.1} parent=1 // pred_check
      _
    $region19: #{tpu_custom_call.1} parent=1 // pred_check_branch
      %142 = sbr.rel (0) target = $region21
    $region20: #{tpu_custom_call.1} parent=1 // pred_region
      %143 = dma.done [#allocation4], 16
    $region21: #{tpu_custom_call.1} parent=1 // pred_fallthru
      _
    %144 = vsyncpa [#allocation3], 1
    %145 = vsyncpa [#allocation4], 1

</llo_original>
